<compile_context>
chip_gen: v7x
topology: tpu7x:2x2x1
jax: 0.10.0
libtpu: 0.0.40
codegen_flags: <defaults>
</compile_context>

<pallas_src>
import numpy as np

import jax
import jax.numpy as jnp
from jax.experimental import pallas as pl
from jax.experimental.pallas import tpu as pltpu

# SSIM constants from cal_ssim: K=[0.01, 0.03], L=255.  The kernel works on [0,1]
# images (no *255), so the constants are pre-divided by 255^2 — SSIM is exactly
# invariant under this rescale (all terms are degree-2 homogeneous).
_C1_UNIT = 0.01 ** 2          # == (0.01 * 255)^2 / 255^2
_C2_UNIT = 0.03 ** 2          # == (0.03 * 255)^2 / 255^2

# Per-image scalar results are written once as a lane-dense (8,128) block
# (one full f32 vreg, unmasked store); lane 0 = numerator, lane 1 = denominator.
_OUT_SUB, _OUT_LANE = 8, 128


def _gaussian_kernel_1d(ksz=11, sigma=1.5):
    """Matches cv2.getGaussianKernel(11, 1.5) (normalized 1-D Gaussian)."""
    x = np.arange(ksz, dtype=np.float64) - (ksz - 1) / 2.0
    k = np.exp(-(x * x) / (2.0 * sigma * sigma))
    return k / k.sum()


def _blur_matrices(H, W, bi, k1d):
    """Banded matrices implementing crop(boundary_ignore) + 'same' zero-padded
    separable Gaussian blur:  conv2d(crop(X), window, 'same') == Th @ X @ TwT
    where X is the FULL (uncropped) image -> no host-side slicing copies."""
    ksz = k1d.shape[0]
    half = ksz // 2
    hc, wc = H - 2 * bi, W - 2 * bi

    def band(n_out, n_full):
        out_idx = np.arange(n_out)[:, None]        # cropped-conv output index
        full_idx = np.arange(n_full)[None, :]      # full (uncropped) index
        tap = (full_idx - bi) - out_idx + half     # Gaussian tap index
        in_crop = (full_idx >= bi) & (full_idx < n_full - bi)
        in_win = (tap >= 0) & (tap < ksz)
        mat = np.where(in_crop & in_win, k1d[np.clip(tap, 0, ksz - 1)], 0.0)
        return mat.astype(np.float32)

    th = band(hc, H)              # (hc, H): crop + vertical blur
    twt = band(wc, W).T           # (W, wc): horizontal blur + crop (transposed)
    return jnp.asarray(th), jnp.asarray(twt)


def _ssim_map_from_refs(pred_ref, gt_ref, th_ref, twt_ref):
    """SSIM map of the (cropped) channel-0 image pair, entirely in VMEM/registers."""
    th = th_ref[...]              # (Hc, H)
    twt = twt_ref[...]            # (W, Wc)

    # Cast to f32 only inside the kernel: bf16 inputs stay bf16 in HBM.
    a = pred_ref[...].astype(jnp.float32)
    b = gt_ref[...].astype(jnp.float32)
    H = a.shape[0]

    # Batched horizontal pass: stack the five blur inputs along the sublane axis and
    # issue ONE (5H, W) @ (W, Wc) MXU matmul, then finish each H-row slab with the
    # vertical (Hc, H) @ (H, Wc) pass.  6 MXU pushes total instead of 10.
    xs = jnp.concatenate([a, b, a * a, b * b, a * b], axis=0)        # (5H, W)
    ys = jnp.dot(xs, twt, preferred_element_type=jnp.float32)        # (5H, Wc)

    def vpass(i):                 # static, sublane-aligned slab slice (i*H % 8 == 0)
        return jnp.dot(th, ys[i * H:(i + 1) * H, :],
                       preferred_element_type=jnp.float32)           # (Hc, Wc)

    mu1, mu2, e11, e22, e12 = [vpass(i) for i in range(5)]

    mu1_sq = mu1 * mu1
    mu2_sq = mu2 * mu2
    mu1_mu2 = mu1 * mu2
    sigma1_sq = e11 - mu1_sq
    sigma2_sq = e22 - mu2_sq
    sigma12 = e12 - mu1_mu2

    num_map = (2.0 * mu1_mu2 + _C1_UNIT) * (2.0 * sigma12 + _C2_UNIT)
    den_map = (mu1_sq + mu2_sq + _C1_UNIT) * (sigma1_sq + sigma2_sq + _C2_UNIT)
    # Approx reciprocal -> EUP slot instead of a multi-op VALU divide per pixel.
    return num_map * pl.reciprocal(den_map, approx=True)


def _aligned_ssim_masked_kernel(pred_ref, gt_ref, valid_ref, th_ref, twt_ref,
                                out_ref):
    ssim_map = _ssim_map_from_refs(pred_ref, gt_ref, th_ref, twt_ref)
    # valid_ref is already the boundary-cropped (Hc, Wc) window (cropped once in the
    # wrapper) -> no misaligned in-kernel slice / relayout, no wasted border DMA.
    v = valid_ref[...].astype(jnp.float32)
    num = jnp.sum(ssim_map * v)
    den = jnp.sum(v)
    # Pack both scalars into a single lane-dense (1, 8, 128) block:
    # lane 0 = num, lane 1 = den, rest zero.  One unmasked full-width store.
    lane = jax.lax.broadcasted_iota(jnp.int32, out_ref.shape, 2)
    out_ref[...] = jnp.where(lane == 0, num, jnp.where(lane == 1, den, 0.0))


def _aligned_ssim_unmasked_kernel(pred_ref, gt_ref, th_ref, twt_ref, out_ref):
    # valid=None path: plain sum of the SSIM map -- no all-ones tensor is DMA'd.
    ssim_map = _ssim_map_from_refs(pred_ref, gt_ref, th_ref, twt_ref)
    out_ref[...] = jnp.broadcast_to(jnp.sum(ssim_map), out_ref.shape)


def _compiler_params(H, W, Hc, Wc):
    """grid=(B,) parallel; raise the scoped-VMEM limit only when the static per-step
    footprint (double-buffered inputs + banded matrices + live f32 temporaries such
    as the (5H,W)/(5H,Wc) stacks and the SSIM-map chain) exceeds the conservative
    16 MiB default."""
    est_bytes = 4 * (30 * H * W + 6 * (Hc * H + W * Wc)) + (2 << 20)
    kwargs = dict(dimension_semantics=("parallel",))
    if est_bytes > (16 << 20):
        # TODO(synk): row-tile Hc on a second "arbitrary" grid axis for images whose
        # footprint approaches physical VMEM (v7x: 64 MiB/TC) instead of capping.
        kwargs["vmem_limit_bytes"] = int(min(est_bytes, 64 << 20))
    return pltpu.CompilerParams(**kwargs)


@jax.jit
def _ssim_sums_masked(pred, gt, valid, th, twt):
    B, _, H, W = pred.shape
    Hc = th.shape[0]
    Wc = twt.shape[1]
    bi_h = (H - Hc) // 2
    bi_w = (W - Wc) // 2
    # boundary_ignore crop of the mask, done ONCE here as a single XLA slice.
    valid_c = jax.lax.slice(valid, (0, 0, bi_h, bi_w), (B, 1, bi_h + Hc, bi_w + Wc))

    img_spec = pl.BlockSpec((None, None, H, W), lambda b: (b, 0, 0, 0))
    msk_spec = pl.BlockSpec((None, None, Hc, Wc), lambda b: (b, 0, 0, 0))
    mat_h_spec = pl.BlockSpec((Hc, H), lambda b: (0, 0))
    mat_w_spec = pl.BlockSpec((W, Wc), lambda b: (0, 0))
    out_spec = pl.BlockSpec((1, _OUT_SUB, _OUT_LANE), lambda b: (b, 0, 0))

    out = pl.pallas_call(
        _aligned_ssim_masked_kernel,
        out_shape=jax.ShapeDtypeStruct((B, _OUT_SUB, _OUT_LANE), jnp.float32),
        grid_spec=pltpu.PrefetchScalarGridSpec(
            num_scalar_prefetch=0,
            grid=(B,),
            in_specs=[img_spec, img_spec, msk_spec, mat_h_spec, mat_w_spec],
            out_specs=out_spec,
        ),
        compiler_params=_compiler_params(H, W, Hc, Wc),
    )(pred, gt, valid_c, th, twt)
    return out[:, 0, 0], out[:, 0, 1]


@jax.jit
def _ssim_sums_unmasked(pred, gt, th, twt):
    B, _, H, W = pred.shape
    Hc = th.shape[0]
    Wc = twt.shape[1]
    img_spec = pl.BlockSpec((None, None, H, W), lambda b: (b, 0, 0, 0))
    mat_h_spec = pl.BlockSpec((Hc, H), lambda b: (0, 0))
    mat_w_spec = pl.BlockSpec((W, Wc), lambda b: (0, 0))
    out_spec = pl.BlockSpec((1, _OUT_SUB, _OUT_LANE), lambda b: (b, 0, 0))
    out = pl.pallas_call(
        _aligned_ssim_unmasked_kernel,
        out_shape=jax.ShapeDtypeStruct((B, _OUT_SUB, _OUT_LANE), jnp.float32),
        grid_spec=pltpu.PrefetchScalarGridSpec(
            num_scalar_prefetch=0,
            grid=(B,),
            in_specs=[img_spec, img_spec, mat_h_spec, mat_w_spec],
            out_specs=out_spec,
        ),
        compiler_params=_compiler_params(H, W, Hc, Wc),
    )(pred, gt, th, twt)
    return out[:, 0, 0]


class AlignedSSIM:
    """JAX/Pallas port of the AlignedSSIM metric core.

    # TODO(synk): the AlignedPred stage (alignment_net optical-flow inference,
    # warp(), F.interpolate flow downsampling, sca_utils.match_colors) requires an
    # external trained network and is not translatable to a standalone Pallas
    # kernel; `pred` is assumed to already be the warped, color-matched prediction
    # and `valid` its validity mask.
    """

    def __init__(self, alignment_net=None, sr_factor=4, boundary_ignore=None,
                 max_value=1.0):
        self.alignment_net = alignment_net
        self.sr_factor = sr_factor
        self.boundary_ignore = boundary_ignore
        self.max_value = max_value
        self._k1d = _gaussian_kernel_1d(11, 1.5)
        self._mat_cache = {}

    def _mats(self, H, W, bi):
        key = (H, W, bi)
        if key not in self._mat_cache:
            self._mat_cache[key] = _blur_matrices(H, W, bi, self._k1d)
        return self._mat_cache[key]

    def forward(self, pred, gt, valid=None):
        pred = jnp.asarray(pred)   # keep stored dtype; cast to f32 inside the kernel
        gt = jnp.asarray(gt)
        _, _, H, W = pred.shape
        bi = int(self.boundary_ignore) if self.boundary_ignore is not None else 0
        th, twt = self._mats(H, W, bi)
        hc, wc = H - 2 * bi, W - 2 * bi

        if valid is None:
            num = _ssim_sums_unmasked(pred, gt, th, twt)
            ssim_per_image = num / jnp.float32(hc * wc)
        else:
            valid = jnp.asarray(valid)
            assert valid.shape[1] == 1, "valid is expected as (B, 1, H, W)"
            # elem_ratio = ssim_map.numel() / squeeze(valid).numel() == 1 here,
            # exactly as in the PyTorch module for the standard 1-channel mask.
            num, den = _ssim_sums_masked(pred, gt, valid, th, twt)
            ssim_per_image = num / (den + 1e-12)

        return jnp.mean(ssim_per_image)   # == sum(ssim_all) / len(ssim_all)

    __call__ = forward


if __name__ == "__main__":
    key = jax.random.PRNGKey(0)
    k1, k2 = jax.random.split(key, 2)

    B, C, H, W = 2, 3, 32, 32
    bi = 2

    pred = jax.random.uniform(k1, (B, C, H, W), dtype=jnp.float32)
    # gt = pred + spatially varying noise: nearly clean on the left half, strongly
    # corrupted on the right half -> the masked (left-half) SSIM differs a lot from
    # the unmasked mean, so a masking bug cannot hide inside the tolerance.
    col = jnp.arange(W, dtype=jnp.float32)[None, None, None, :]
    noise_sd = jnp.where(col < W // 2, 0.02, 0.35)
    gt = jnp.clip(pred + noise_sd * jax.random.normal(k2, (B, C, H, W),
                                                      dtype=jnp.float32), 0.0, 1.0)
    valid = jnp.broadcast_to((col < W // 2).astype(jnp.float32), (B, 1, H, W))

    metric = AlignedSSIM(alignment_net=None, boundary_ignore=bi)
    out_masked = metric(pred, gt, valid)
    out_unmasked = metric(pred, gt)          # no all-ones mask is ever DMA'd
    jax.block_until_ready((out_masked, out_unmasked))

    # ---- float64 NumPy reference (mirrors cal_ssim + AlignedSSIM.ssim exactly,
    # i.e. with the original *255 scaling and C1/C2) ----
    def conv2d_same(img, window):
        hh, ww = img.shape
        kh, kw = window.shape
        ph, pw = kh // 2, kw // 2
        pad = np.zeros((hh + 2 * ph, ww + 2 * pw), np.float64)
        pad[ph:ph + hh, pw:pw + ww] = img
        out = np.zeros((hh, ww), np.float64)
        for u in range(kh):
            for v in range(kw):
                out += window[u, v] * pad[u:u + hh, v:v + ww]
        return out

    C1_REF = (0.01 * 255.0) ** 2
    C2_REF = (0.03 * 255.0) ** 2
    k1d = _gaussian_kernel_1d(11, 1.5)
    window = np.outer(k1d, k1d)
    pred_np = np.asarray(pred, np.float64)
    gt_np = np.asarray(gt, np.float64)
    valid_np = np.asarray(valid, np.float64)

    ref_masked_all, ref_unmasked_all = [], []
    for b in range(B):
        p = pred_np[b, 0, bi:-bi, bi:-bi] * 255.0
        g = gt_np[b, 0, bi:-bi, bi:-bi] * 255.0
        v = valid_np[b, 0, bi:-bi, bi:-bi]
        mu1 = conv2d_same(p, window)
        mu2 = conv2d_same(g, window)
        s1 = conv2d_same(p * p, window) - mu1 * mu1
        s2 = conv2d_same(g * g, window) - mu2 * mu2
        s12 = conv2d_same(p * g, window) - mu1 * mu2
        ssim_map = ((2 * mu1 * mu2 + C1_REF) * (2 * s12 + C2_REF)
                    / ((mu1 * mu1 + mu2 * mu2 + C1_REF) * (s1 + s2 + C2_REF)))
        elem_ratio = ssim_map.size / v.size
        ref_masked_all.append((ssim_map * v).sum() / (v.sum() * elem_ratio + 1e-12))
        ref_unmasked_all.append(ssim_map.mean())
    ref_masked = float(np.mean(ref_masked_all))
    ref_unmasked = float(np.mean(ref_unmasked_all))

    # Tolerance covers f32 (incl. MXU pass + approx reciprocal) vs. float64 ref.
    assert np.allclose(float(out_masked), ref_masked, rtol=1e-2, atol=1e-3), \
        (float(out_masked), ref_masked)
    assert np.allclose(float(out_unmasked), ref_unmasked, rtol=1e-2, atol=1e-3), \
        (float(out_unmasked), ref_unmasked)

    print("KERNEL_OK")
</pallas_src>

<mosaic_0001>
module attributes {stable_mosaic.version = 11 : i64} {
  func.func @_aligned_ssim_masked_kernel(%arg0: i32, %arg1: memref<1x1x32x32xf32, #tpu.memory_space<vmem>>, %arg2: memref<1x1x32x32xf32, #tpu.memory_space<vmem>>, %arg3: memref<1x1x28x28xf32, #tpu.memory_space<vmem>>, %arg4: memref<28x32xf32, #tpu.memory_space<vmem>>, %arg5: memref<32x28xf32, #tpu.memory_space<vmem>>, %arg6: memref<1x8x128xf32, #tpu.memory_space<vmem>>) attributes {dimension_semantics = [#tpu.dimension_semantics<parallel>], iteration_bounds = array<i64: 2>, scalar_prefetch = 0 : i64, scratch_operands = 0 : i64, tpu.core_type = #tpu.core_type<tc>, window_params = [{transform_indices = @transform_0, window_bounds = array<i64: 1, 1, 32, 32>}, {transform_indices = @transform_1, window_bounds = array<i64: 1, 1, 32, 32>}, {transform_indices = @transform_2, window_bounds = array<i64: 1, 1, 28, 28>}, {pipeline_mode = #tpu.pipeline_mode<synchronous>, transform_indices = @transform_3, window_bounds = array<i64: 28, 32>}, {pipeline_mode = #tpu.pipeline_mode<synchronous>, transform_indices = @transform_4, window_bounds = array<i64: 32, 28>}, {transform_indices = @transform_5, window_bounds = array<i64: 1, 8, 128>}]} {
    %c0 = arith.constant 0 : index
    %c0_0 = arith.constant 0 : index
    %0 = vector.load %arg4[%c0, %c0_0] : memref<28x32xf32, #tpu.memory_space<vmem>>, vector<28x32xf32>
    %c0_1 = arith.constant 0 : index
    %c0_2 = arith.constant 0 : index
    %1 = vector.load %arg5[%c0_1, %c0_2] : memref<32x28xf32, #tpu.memory_space<vmem>>, vector<32x28xf32>
    %c0_3 = arith.constant 0 : index
    %c0_4 = arith.constant 0 : index
    %c0_5 = arith.constant 0 : index
    %c0_6 = arith.constant 0 : index
    %2 = vector.load %arg1[%c0_3, %c0_4, %c0_5, %c0_6] : memref<1x1x32x32xf32, #tpu.memory_space<vmem>>, vector<1x1x32x32xf32>
    %3 = vector.shape_cast %2 : vector<1x1x32x32xf32> to vector<32x32xf32>
    %c0_7 = arith.constant 0 : index
    %c0_8 = arith.constant 0 : index
    %c0_9 = arith.constant 0 : index
    %c0_10 = arith.constant 0 : index
    %4 = vector.load %arg2[%c0_7, %c0_8, %c0_9, %c0_10] : memref<1x1x32x32xf32, #tpu.memory_space<vmem>>, vector<1x1x32x32xf32>
    %5 = vector.shape_cast %4 : vector<1x1x32x32xf32> to vector<32x32xf32>
    %6 = arith.mulf %3, %3 : vector<32x32xf32>
    %7 = arith.mulf %5, %5 : vector<32x32xf32>
    %8 = arith.mulf %3, %5 : vector<32x32xf32>
    %9 = tpu.concatenate %3, %5, %6, %7, %8 in 0 : vector<32x32xf32>, vector<32x32xf32>, vector<32x32xf32>, vector<32x32xf32>, vector<32x32xf32> -> vector<160x32xf32>
    %cst = arith.constant dense<0.000000e+00> : vector<160x28xf32>
    %10 = tpu.matmul %9, %1, %cst {dimension_numbers = #tpu.dot_dimension_numbers<[1], [0], [0], [1], [0, 0, 1, 1], [], []>} : vector<160x32xf32>, vector<32x28xf32>, vector<160x28xf32> -> vector<160x28xf32>
    %11 = vector.extract_strided_slice %10 {offsets = [0, 0], sizes = [32, 28], strides = [1, 1]} : vector<160x28xf32> to vector<32x28xf32>
    %cst_11 = arith.constant dense<0.000000e+00> : vector<28x28xf32>
    %12 = tpu.matmul %0, %11, %cst_11 {dimension_numbers = #tpu.dot_dimension_numbers<[1], [0], [0], [1], [0, 0, 1, 1], [], []>} : vector<28x32xf32>, vector<32x28xf32>, vector<28x28xf32> -> vector<28x28xf32>
    %13 = vector.extract_strided_slice %10 {offsets = [32, 0], sizes = [32, 28], strides = [1, 1]} : vector<160x28xf32> to vector<32x28xf32>
    %cst_12 = arith.constant dense<0.000000e+00> : vector<28x28xf32>
    %14 = tpu.matmul %0, %13, %cst_12 {dimension_numbers = #tpu.dot_dimension_numbers<[1], [0], [0], [1], [0, 0, 1, 1], [], []>} : vector<28x32xf32>, vector<32x28xf32>, vector<28x28xf32> -> vector<28x28xf32>
    %15 = vector.extract_strided_slice %10 {offsets = [64, 0], sizes = [32, 28], strides = [1, 1]} : vector<160x28xf32> to vector<32x28xf32>
    %cst_13 = arith.constant dense<0.000000e+00> : vector<28x28xf32>
    %16 = tpu.matmul %0, %15, %cst_13 {dimension_numbers = #tpu.dot_dimension_numbers<[1], [0], [0], [1], [0, 0, 1, 1], [], []>} : vector<28x32xf32>, vector<32x28xf32>, vector<28x28xf32> -> vector<28x28xf32>
    %17 = vector.extract_strided_slice %10 {offsets = [96, 0], sizes = [32, 28], strides = [1, 1]} : vector<160x28xf32> to vector<32x28xf32>
    %cst_14 = arith.constant dense<0.000000e+00> : vector<28x28xf32>
    %18 = tpu.matmul %0, %17, %cst_14 {dimension_numbers = #tpu.dot_dimension_numbers<[1], [0], [0], [1], [0, 0, 1, 1], [], []>} : vector<28x32xf32>, vector<32x28xf32>, vector<28x28xf32> -> vector<28x28xf32>
    %19 = vector.extract_strided_slice %10 {offsets = [128, 0], sizes = [32, 28], strides = [1, 1]} : vector<160x28xf32> to vector<32x28xf32>
    %cst_15 = arith.constant dense<0.000000e+00> : vector<28x28xf32>
    %20 = tpu.matmul %0, %19, %cst_15 {dimension_numbers = #tpu.dot_dimension_numbers<[1], [0], [0], [1], [0, 0, 1, 1], [], []>} : vector<28x32xf32>, vector<32x28xf32>, vector<28x28xf32> -> vector<28x28xf32>
    %21 = arith.mulf %12, %12 : vector<28x28xf32>
    %22 = arith.mulf %14, %14 : vector<28x28xf32>
    %23 = arith.mulf %12, %14 : vector<28x28xf32>
    %24 = arith.subf %16, %21 : vector<28x28xf32>
    %25 = arith.subf %18, %22 : vector<28x28xf32>
    %26 = arith.subf %20, %23 : vector<28x28xf32>
    %cst_16 = arith.constant 2.000000e+00 : f32
    %27 = vector.broadcast %cst_16 : f32 to vector<28x28xf32>
    %28 = arith.mulf %27, %23 : vector<28x28xf32>
    %cst_17 = arith.constant 9.99999974E-5 : f32
    %29 = vector.broadcast %cst_17 : f32 to vector<28x28xf32>
    %30 = arith.addf %28, %29 : vector<28x28xf32>
    %cst_18 = arith.constant 2.000000e+00 : f32
    %31 = vector.broadcast %cst_18 : f32 to vector<28x28xf32>
    %32 = arith.mulf %31, %26 : vector<28x28xf32>
    %cst_19 = arith.constant 8.99999984E-4 : f32
    %33 = vector.broadcast %cst_19 : f32 to vector<28x28xf32>
    %34 = arith.addf %32, %33 : vector<28x28xf32>
    %35 = arith.mulf %30, %34 : vector<28x28xf32>
    %36 = arith.addf %21, %22 : vector<28x28xf32>
    %cst_20 = arith.constant 9.99999974E-5 : f32
    %37 = vector.broadcast %cst_20 : f32 to vector<28x28xf32>
    %38 = arith.addf %36, %37 : vector<28x28xf32>
    %39 = arith.addf %24, %25 : vector<28x28xf32>
    %cst_21 = arith.constant 8.99999984E-4 : f32
    %40 = vector.broadcast %cst_21 : f32 to vector<28x28xf32>
    %41 = arith.addf %39, %40 : vector<28x28xf32>
    %42 = arith.mulf %38, %41 : vector<28x28xf32>
    %43 = tpu.reciprocal %42 {approx = true} : vector<28x28xf32> -> vector<28x28xf32>
    %44 = arith.mulf %35, %43 : vector<28x28xf32>
    %c0_22 = arith.constant 0 : index
    %c0_23 = arith.constant 0 : index
    %c0_24 = arith.constant 0 : index
    %c0_25 = arith.constant 0 : index
    %45 = vector.load %arg3[%c0_22, %c0_23, %c0_24, %c0_25] : memref<1x1x28x28xf32, #tpu.memory_space<vmem>>, vector<1x1x28x28xf32>
    %46 = vector.shape_cast %45 : vector<1x1x28x28xf32> to vector<28x28xf32>
    %47 = arith.mulf %44, %46 : vector<28x28xf32>
    %48 = vector.shape_cast %47 : vector<28x28xf32> to vector<1x28x28xf32>
    %cst_26 = arith.constant dense<0.000000e+00> : vector<1xf32>
    %49 = vector.multi_reduction <add>, %48, %cst_26 [1, 2] : vector<1x28x28xf32> to vector<1xf32>
    %50 = vector.shape_cast %49 : vector<1xf32> to vector<1x1x1xf32>
    %51 = vector.extract %50[0, 0, 0] : f32 from vector<1x1x1xf32>
    %52 = vector.shape_cast %46 : vector<28x28xf32> to vector<1x28x28xf32>
    %cst_27 = arith.constant dense<0.000000e+00> : vector<1xf32>
    %53 = vector.multi_reduction <add>, %52, %cst_27 [1, 2] : vector<1x28x28xf32> to vector<1xf32>
    %54 = vector.shape_cast %53 : vector<1xf32> to vector<1x1x1xf32>
    %55 = vector.extract %54[0, 0, 0] : f32 from vector<1x1x1xf32>
    %56 = tpu.iota {dimensions = array<i32: 2>} : vector<1x8x128xi32>
    %c0_i32 = arith.constant 0 : i32
    %57 = vector.broadcast %c0_i32 : i32 to vector<1x8x128xi32>
    %58 = arith.cmpi eq, %56, %57 : vector<1x8x128xi32>
    %c1_i32 = arith.constant 1 : i32
    %59 = vector.broadcast %c1_i32 : i32 to vector<1x8x128xi32>
    %60 = arith.cmpi eq, %56, %59 : vector<1x8x128xi32>
    %cst_28 = arith.constant 0.000000e+00 : f32
    %61 = vector.broadcast %55 : f32 to vector<1x8x128xf32>
    %62 = vector.broadcast %cst_28 : f32 to vector<1x8x128xf32>
    %63 = arith.select %60, %61, %62 : vector<1x8x128xi1>, vector<1x8x128xf32>
    %64 = vector.broadcast %51 : f32 to vector<1x8x128xf32>
    %65 = arith.select %58, %64, %63 : vector<1x8x128xi1>, vector<1x8x128xf32>
    %c0_29 = arith.constant 0 : index
    %c0_30 = arith.constant 0 : index
    %c0_31 = arith.constant 0 : index
    %66 = vector.load %arg6[%c0_29, %c0_30, %c0_31] : memref<1x8x128xf32, #tpu.memory_space<vmem>>, vector<1x8x128xf32>
    tpu.vector_store %arg6[%c0_29, %c0_30, %c0_31], %65 {strides = array<i32>} : memref<1x8x128xf32, #tpu.memory_space<vmem>>, vector<1x8x128xf32>,
    return
  }
  func.func @transform_0(%arg0: i32) -> (i32, i32, i32, i32) {
    %c0_i32 = arith.constant 0 : i32
    %c0_i32_0 = arith.constant 0 : i32
    %c0_i32_1 = arith.constant 0 : i32
    %c0_i32_2 = arith.constant 0 : i32
    return %arg0, %c0_i32, %c0_i32_0, %c0_i32_1 : i32, i32, i32, i32
  }
  func.func @transform_1(%arg0: i32) -> (i32, i32, i32, i32) {
    %c0_i32 = arith.constant 0 : i32
    %c0_i32_0 = arith.constant 0 : i32
    %c0_i32_1 = arith.constant 0 : i32
    %c0_i32_2 = arith.constant 0 : i32
    return %arg0, %c0_i32, %c0_i32_0, %c0_i32_1 : i32, i32, i32, i32
  }
  func.func @transform_2(%arg0: i32) -> (i32, i32, i32, i32) {
    %c0_i32 = arith.constant 0 : i32
    %c0_i32_0 = arith.constant 0 : i32
    %c0_i32_1 = arith.constant 0 : i32
    %c0_i32_2 = arith.constant 0 : i32
    return %arg0, %c0_i32, %c0_i32_0, %c0_i32_1 : i32, i32, i32, i32
  }
  func.func @transform_3(%arg0: i32) -> (i32, i32) {
    %c0_i32 = arith.constant 0 : i32
    %c0_i32_0 = arith.constant 0 : i32
    %c0_i32_1 = arith.constant 0 : i32
    return %c0_i32, %c0_i32_0 : i32, i32
  }
  func.func @transform_4(%arg0: i32) -> (i32, i32) {
    %c0_i32 = arith.constant 0 : i32
    %c0_i32_0 = arith.constant 0 : i32
    %c0_i32_1 = arith.constant 0 : i32
    return %c0_i32, %c0_i32_0 : i32, i32
  }
  func.func @transform_5(%arg0: i32) -> (i32, i32, i32) {
    %c0_i32 = arith.constant 0 : i32
    %c0_i32_0 = arith.constant 0 : i32
    %c0_i32_1 = arith.constant 0 : i32
    return %arg0, %c0_i32, %c0_i32_0 : i32, i32, i32
  }
}

</mosaic_0001>

<llo_original>
// kernel: _ssim_sums_masked.1
$region0: #{_ssim_sums_masked.1}
  #allocation0 [shape = 'u32[]', space=smem, size = 0x4, offset = 0x4, fixed_abs, tag = 'smem constant byte address 0x4 - core index']
  #allocation1 [shape = 'u32[144,128]{1,0:T(1,128)}', space=vmem, size = 0x12000, scoped, tag = 'internal scratch']
  %s0 = inlined_call_operand.hbm [shape: f32[2,3,32,32], index: 0, kind: input, shape index: {}]
  %s1 = inlined_call_operand.hbm [shape: f32[2,3,32,32], index: 1, kind: input, shape index: {}]
  %s2 = inlined_call_operand.vmem [shape: f32[2,1,28,28], index: 2, kind: input, shape index: {}]
  %s3 = inlined_call_operand.vmem [shape: f32[28,32], index: 3, kind: input, shape index: {}]
  %s4 = inlined_call_operand.vmem [shape: f32[32,28], index: 4, kind: input, shape index: {}]
  %s5 = inlined_call_operand.vmem [shape: f32[2,8,128], index: 5, kind: output, shape index: {}]
  %s6 = sld [smem:[#allocation0]]
  $region61: #{_ssim_sums_masked.1} parent=0
    _
  %s8 = ssub.s32 1, %s6
  %s9 = scalar_select 0, %s8, %s6
  $region1: #{_ssim_sums_masked.1} parent=0
    #allocation2 [shape = 'u8[32768]{0}', space=vmem, size = 0x8000, scoped, tag = 'input window, operand 0']
    #allocation3 [shape = 's32[2]{0}', space=sflag, size = 0x8, scoped, tag = 'scoped memory for _ssim_sums_masked.1']
    #allocation4 [shape = 'u8[32768]{0}', space=vmem, size = 0x8000, scoped, tag = 'input window, operand 1']
    #allocation5 [shape = 's32[2]{0}', space=sflag, size = 0x8, scoped, tag = 'scoped memory for _ssim_sums_masked.1']
    %10 = vsyncpa [#allocation3], 0
    %s11 = scalar_lea.sflag [#allocation3], 1
    %12 = vsyncpa %s11, 0
    %13 = vsyncpa [#allocation5], 0
    %s14 = scalar_lea.sflag [#allocation5], 1
    %15 = vsyncpa %s14, 0
    loop: start=0, step=1, limit=4
    $region2: #{_ssim_sums_masked.1} parent=1 // loop_pre_header
      _
    $region3: #{_ssim_sums_masked.1} parent=1 // loop_header
      %s17 = sphi 0, %s21
      %p18 = scmp.ge.s32.totalorder %s17, 4
      %s27 = sphi 0, %s29
      %s30 = sphi 0, %s27
      %s31 = sphi 0, %s30
      %s47 = sphi 0, %s31
      %s53 = sphi 0, %s55
      %s56 = sphi 0, %s53
      %s57 = sphi 0, %s56
      %s73 = sphi 0, %s57
      %s79 = sphi 0, %s81
      %s82 = sphi 0, %s79
      %s83 = sphi 0, %s82
      %s99 = sphi 0, %s83
      %s103 = sphi 0, %s103
      %s105 = sphi 0, %s103
      %s106 = sphi 0, %s105
      %s120 = sphi 0, %s106
      %s124 = sphi 0, %s124
      %s126 = sphi 0, %s124
      %s127 = sphi 0, %s126
      %s141 = sphi 0, %s127
      %s147 = sphi 0, %s149
      %s150 = sphi 0, %s147
      %s151 = sphi 0, %s150
      %s167 = sphi 0, %s151
    $region4: #{_ssim_sums_masked.1} parent=1 // loop_header_branch
      %20 = sbr.rel (%p18) target = $region8
    $region5: #{_ssim_sums_masked.1} parent=1 // loop_body
      %s22 = ssub.s32 %s17, 1
      %s23 = ssub.s32 %s17, 2
      %s24 = sadd.s32 %s17, 1
      %s25 = ssub.s32 %s17, %s24
      %p26 = scmp.eq.s32.totalorder %s25, 0
      %s28 = sadd.s32 %s27, 1
      %s29 = scalar_select %p26, %s27, %s28
      %p32 = pneg %p26
      %p33 = scmp.eq.s32.totalorder %s17, 1
      %p34 = por %p32, %p33
      %p35 = scmp.ne.s32.totalorder %s27, %s30
      %p36 = scmp.eq.s32.totalorder %s17, 0
      %p37 = por %p35, %p36
      %p38 = scmp.ne.s32.totalorder %s27, %s30
      %p39 = scmp.eq.s32.totalorder %s22, 1
      %p40 = por %p38, %p39
      %p41 = scmp.ne.s32.totalorder %s30, %s31
      %p42 = scmp.eq.s32.totalorder %s22, 0
      %p43 = por %p41, %p42
      %p44 = scmp.ne.s32.totalorder %s30, %s31
      %p45 = scmp.eq.s32.totalorder %s23, 1
      %p46 = por %p44, %p45
      %p48 = scmp.ne.s32.totalorder %s31, %s47
      %p49 = scmp.eq.s32.totalorder %s23, 0
      %p50 = por %p48, %p49
      %s51 = ssub.s32 %s17, %s24
      %p52 = scmp.eq.s32.totalorder %s51, 0
      %s54 = sadd.s32 %s53, 1
      %s55 = scalar_select %p52, %s53, %s54
      %p58 = pneg %p52
      %p59 = scmp.eq.s32.totalorder %s17, 1
      %p60 = por %p58, %p59
      %p61 = scmp.ne.s32.totalorder %s53, %s56
      %p62 = scmp.eq.s32.totalorder %s17, 0
      %p63 = por %p61, %p62
      %p64 = scmp.ne.s32.totalorder %s53, %s56
      %p65 = scmp.eq.s32.totalorder %s22, 1
      %p66 = por %p64, %p65
      %p67 = scmp.ne.s32.totalorder %s56, %s57
      %p68 = scmp.eq.s32.totalorder %s22, 0
      %p69 = por %p67, %p68
      %p70 = scmp.ne.s32.totalorder %s56, %s57
      %p71 = scmp.eq.s32.totalorder %s23, 1
      %p72 = por %p70, %p71
      %p74 = scmp.ne.s32.totalorder %s57, %s73
      %p75 = scmp.eq.s32.totalorder %s23, 0
      %p76 = por %p74, %p75
      %s77 = ssub.s32 %s17, %s24
      %p78 = scmp.eq.s32.totalorder %s77, 0
      %s80 = sadd.s32 %s79, 1
      %s81 = scalar_select %p78, %s79, %s80
      %p84 = pneg %p78
      %p85 = scmp.eq.s32.totalorder %s17, 1
      %p86 = por %p84, %p85
      %p87 = scmp.ne.s32.totalorder %s79, %s82
      %p88 = scmp.eq.s32.totalorder %s17, 0
      %p89 = por %p87, %p88
      %p90 = scmp.ne.s32.totalorder %s79, %s82
      %p91 = scmp.eq.s32.totalorder %s22, 1
      %p92 = por %p90, %p91
      %p93 = scmp.ne.s32.totalorder %s82, %s83
      %p94 = scmp.eq.s32.totalorder %s22, 0
      %p95 = por %p93, %p94
      %p96 = scmp.ne.s32.totalorder %s82, %s83
      %p97 = scmp.eq.s32.totalorder %s23, 1
      %p98 = por %p96, %p97
      %p100 = scmp.ne.s32.totalorder %s83, %s99
      %p101 = scmp.eq.s32.totalorder %s23, 0
      %p102 = por %p100, %p101
      %s104 = sadd.s32 %s103, 1
      %p107 = scmp.eq.s32.totalorder %s17, 1
      %p108 = scmp.ne.s32.totalorder %s103, %s105
      %p109 = scmp.eq.s32.totalorder %s17, 0
      %p110 = por %p108, %p109
      %p111 = scmp.ne.s32.totalorder %s103, %s105
      %p112 = scmp.eq.s32.totalorder %s22, 1
      %p113 = por %p111, %p112
      %p114 = scmp.ne.s32.totalorder %s105, %s106
      %p115 = scmp.eq.s32.totalorder %s22, 0
      %p116 = por %p114, %p115
      %p117 = scmp.ne.s32.totalorder %s105, %s106
      %p118 = scmp.eq.s32.totalorder %s23, 1
      %p119 = por %p117, %p118
      %p121 = scmp.ne.s32.totalorder %s106, %s120
      %p122 = scmp.eq.s32.totalorder %s23, 0
      %p123 = por %p121, %p122
      %s125 = sadd.s32 %s124, 1
      %p128 = scmp.eq.s32.totalorder %s17, 1
      %p129 = scmp.ne.s32.totalorder %s124, %s126
      %p130 = scmp.eq.s32.totalorder %s17, 0
      %p131 = por %p129, %p130
      %p132 = scmp.ne.s32.totalorder %s124, %s126
      %p133 = scmp.eq.s32.totalorder %s22, 1
      %p134 = por %p132, %p133
      %p135 = scmp.ne.s32.totalorder %s126, %s127
      %p136 = scmp.eq.s32.totalorder %s22, 0
      %p137 = por %p135, %p136
      %p138 = scmp.ne.s32.totalorder %s126, %s127
      %p139 = scmp.eq.s32.totalorder %s23, 1
      %p140 = por %p138, %p139
      %p142 = scmp.ne.s32.totalorder %s127, %s141
      %p143 = scmp.eq.s32.totalorder %s23, 0
      %p144 = por %p142, %p143
      %s145 = ssub.s32 %s17, %s24
      %p146 = scmp.eq.s32.totalorder %s145, 0
      %s148 = sadd.s32 %s147, 1
      %s149 = scalar_select %p146, %s147, %s148
      %p152 = pneg %p146
      %p153 = scmp.eq.s32.totalorder %s17, 1
      %p154 = por %p152, %p153
      %p155 = scmp.ne.s32.totalorder %s147, %s150
      %p156 = scmp.eq.s32.totalorder %s17, 0
      %p157 = por %p155, %p156
      %p158 = scmp.ne.s32.totalorder %s147, %s150
      %p159 = scmp.eq.s32.totalorder %s22, 1
      %p160 = por %p158, %p159
      %p161 = scmp.ne.s32.totalorder %s150, %s151
      %p162 = scmp.eq.s32.totalorder %s22, 0
      %p163 = por %p161, %p162
      %p164 = scmp.ne.s32.totalorder %s150, %s151
      %p165 = scmp.eq.s32.totalorder %s23, 1
      %p166 = por %p164, %p165
      %p168 = scmp.ne.s32.totalorder %s151, %s167
      %p169 = scmp.eq.s32.totalorder %s23, 0
      %p170 = por %p168, %p169
      %p171 = scmp.le.s32.totalorder 1, %s17
      %p172 = scmp.lt.s32.totalorder %s17, 3
      %p173 = pnand %p171, %p172
      %p174 = pneg %p173
      // Predicated region
      $region9: #{_ssim_sums_masked.1} parent=5 // pred_check
        _
      $region10: #{_ssim_sums_masked.1} parent=5 // pred_check_branch
        %176 = sbr.rel (%p173) target = $region12
      $region11: #{_ssim_sums_masked.1} parent=5 // pred_region
        %s177 = ssub.s32 %s17, 1
        // Predicated region
        $region13: #{_ssim_sums_masked.1} parent=11 // pred_check
          %p178 = pneg %p116
        $region14: #{_ssim_sums_masked.1} parent=11 // pred_check_branch
          %180 = sbr.rel (%p178) target = $region16
        $region15: #{_ssim_sums_masked.1} parent=11 // pred_region
          _
        $region16: #{_ssim_sums_masked.1} parent=11 // pred_fallthru
          _
        // Predicated region
        $region17: #{_ssim_sums_masked.1} parent=11 // pred_check
          %p181 = pneg %p137
        $region18: #{_ssim_sums_masked.1} parent=11 // pred_check_branch
          %183 = sbr.rel (%p181) target = $region20
        $region19: #{_ssim_sums_masked.1} parent=11 // pred_region
          _
        $region20: #{_ssim_sums_masked.1} parent=11 // pred_fallthru
          _
      $region12: #{_ssim_sums_masked.1} parent=5 // pred_fallthru
        _
      %p184 = scmp.lt.s32.totalorder %s17, 2
      // Predicated region
      $region21: #{_ssim_sums_masked.1} parent=5 // pred_check
        %p185 = pneg %p184
      $region22: #{_ssim_sums_masked.1} parent=5 // pred_check_branch
        %187 = sbr.rel (%p185) target = $region24
      $region23: #{_ssim_sums_masked.1} parent=5 // pred_region
        // Predicated region
        $region25: #{_ssim_sums_masked.1} parent=23 // pred_check
          %p188 = pneg %p37
        $region26: #{_ssim_sums_masked.1} parent=23 // pred_check_branch
          %190 = sbr.rel (%p188) target = $region28
        $region27: #{_ssim_sums_masked.1} parent=23 // pred_region
          %s191 = sand.u32 %s27, 1
          %s192 = scalar_lea.sflag [#allocation3], %s191
          %s193 = sand.u32 %s27, 1
          %s194 = smul.addr %s193, 32
          %s195 = scalar_lea.vmem [#allocation2], %s194
          %s197 = ssub.s32 512, 512
          %198 = vsyncadd %s192, %s197
          %s199 = smul.addr %s17, 12
          %s200 = smul.addr %s199, 128
          %s201 = scalar_lea.hbm %s0, %s200
          %s202 = sshll.u32 %s195, 4
          %s203 = int_to_ptr.vmem [resolvable:$true] %s202
          %208 = dma.hbm_to_vmem [thread:$0]  %s201, 512, %s203, %s192, 128, 128, 8
        $region28: #{_ssim_sums_masked.1} parent=23 // pred_fallthru
          _
        // Predicated region
        $region29: #{_ssim_sums_masked.1} parent=23 // pred_check
          %p209 = pneg %p63
        $region30: #{_ssim_sums_masked.1} parent=23 // pred_check_branch
          %211 = sbr.rel (%p209) target = $region32
        $region31: #{_ssim_sums_masked.1} parent=23 // pred_region
          %s212 = sand.u32 %s53, 1
          %s213 = scalar_lea.sflag [#allocation5], %s212
          %s214 = sand.u32 %s53, 1
          %s215 = smul.addr %s214, 32
          %s216 = scalar_lea.vmem [#allocation4], %s215
          %s218 = ssub.s32 512, 512
          %219 = vsyncadd %s213, %s218
          %s220 = smul.addr %s17, 12
          %s221 = smul.addr %s220, 128
          %s222 = scalar_lea.hbm %s1, %s221
          %s223 = sshll.u32 %s216, 4
          %s224 = int_to_ptr.vmem [resolvable:$true] %s223
          %229 = dma.hbm_to_vmem [thread:$0]  %s222, 512, %s224, %s213, 128, 128, 8
        $region32: #{_ssim_sums_masked.1} parent=23 // pred_fallthru
          _
        // Predicated region
        $region33: #{_ssim_sums_masked.1} parent=23 // pred_check
          %p230 = pneg %p89
        $region34: #{_ssim_sums_masked.1} parent=23 // pred_check_branch
          %232 = sbr.rel (%p230) target = $region36
        $region35: #{_ssim_sums_masked.1} parent=23 // pred_region
          %p233 = scmp.lt.s32.totalorder %s17, 1
          %s234 = scalar_select %p233, %s17, 1
          %s235 = smul.addr %s234, 4
          %s236 = smul.addr %s235, 8
          %s237 = scalar_lea.vmem %s2, %s236
        $region36: #{_ssim_sums_masked.1} parent=23 // pred_fallthru
          _
      $region24: #{_ssim_sums_masked.1} parent=5 // pred_fallthru
        _
      %p238 = scmp.le.s32.totalorder 1, %s17
      %p239 = scmp.lt.s32.totalorder %s17, 3
      %p240 = pnand %p238, %p239
      %p241 = pneg %p240
      // Predicated region
      $region37: #{_ssim_sums_masked.1} parent=5 // pred_check
        _
      $region38: #{_ssim_sums_masked.1} parent=5 // pred_check_branch
        %243 = sbr.rel (%p240) target = $region40
      $region39: #{_ssim_sums_masked.1} parent=5 // pred_region
        %s244 = ssub.s32 %s17, 1
        %s245 = sand.u32 %s30, 1
        %s246 = scalar_lea.sflag [#allocation3], %s245
        %s247 = sand.u32 %s30, 1
        %s248 = smul.addr %s247, 32
        %s249 = scalar_lea.vmem [#allocation2], %s248
        // Predicated region
        $region41: #{_ssim_sums_masked.1} parent=39 // pred_check
          %p250 = pneg %p43
        $region42: #{_ssim_sums_masked.1} parent=39 // pred_check_branch
          %252 = sbr.rel (%p250) target = $region44
        $region43: #{_ssim_sums_masked.1} parent=39 // pred_region
          %253 = dma.done %s246, 512
        $region44: #{_ssim_sums_masked.1} parent=39 // pred_fallthru
          _
        %s254 = sand.u32 %s56, 1
        %s255 = scalar_lea.sflag [#allocation5], %s254
        %s256 = sand.u32 %s56, 1
        %s257 = smul.addr %s256, 32
        %s258 = scalar_lea.vmem [#allocation4], %s257
        // Predicated region
        $region45: #{_ssim_sums_masked.1} parent=39 // pred_check
          %p259 = pneg %p69
        $region46: #{_ssim_sums_masked.1} parent=39 // pred_check_branch
          %261 = sbr.rel (%p259) target = $region48
        $region47: #{_ssim_sums_masked.1} parent=39 // pred_region
          %262 = dma.done %s255, 512
        $region48: #{_ssim_sums_masked.1} parent=39 // pred_fallthru
          _
        %s263 = sand.u32 %s30, 1
        %s264 = scalar_lea.sflag [#allocation3], %s263
        %s265 = sand.u32 %s30, 1
        %s266 = smul.addr %s265, 32
        %s267 = scalar_lea.vmem [#allocation2], %s266
        %p268 = pneg %p43
        %p269 = pneg %p40
        %s270 = sand.u32 %s56, 1
        %s271 = scalar_lea.sflag [#allocation5], %s270
        %s272 = sand.u32 %s56, 1
        %s273 = smul.addr %s272, 32
        %s274 = scalar_lea.vmem [#allocation4], %s273
        %p275 = pneg %p69
        %p276 = pneg %p66
        %p277 = scmp.lt.s32.totalorder %s22, 1
        %s278 = scalar_select %p277, %s22, 1
        %s279 = smul.addr %s278, 4
        %s280 = smul.addr %s279, 8
        %s281 = scalar_lea.vmem %s2, %s280
        %p282 = pneg %p95
        %p283 = pneg %p92
        %p284 = pneg %p116
        %p285 = pneg %p113
        %p286 = pneg %p137
        %p287 = pneg %p134
        %p288 = pneg %p163
        %p289 = pneg %p160
        %p290 = scmp.lt.s32.totalorder %s22, 1
        %s291 = scalar_select %p290, %s22, 1
        %s292 = smul.addr %s291, 8
        %s293 = scalar_lea.vmem %s5, %s292
        %p294 = scmp.lt.s32.totalorder %s22, 1
        %s295 = scalar_select %p294, %s22, 1
        %s296 = smul.addr %s295, 4
        %s297 = smul.addr %s296, 8
        %s298 = scalar_lea.vmem %s2, %s297
        %p299 = scmp.lt.s32.totalorder %s22, 1
        %s300 = scalar_select %p299, %s22, 1
        %s301 = smul.addr %s300, 8
        %s302 = scalar_lea.vmem %s5, %s301
        %v303 = vld [vmem:[%s3] sm:$0xff]
        %v304 = vld [vmem:[%s3 + $0x8] sm:$0xff]
        %v305 = vld [vmem:[%s3 + $0x10] sm:$0xff]
        %v306 = vld [vmem:[%s3 + $0x18] sm:$0xf]
        %v307 = vld [vmem:[%s4] sm:$0xff]
        %v308 = vld [vmem:[%s4 + $0x8] sm:$0xff]
        %v309 = vld [vmem:[%s4 + $0x10] sm:$0xff]
        %v310 = vld [vmem:[%s4 + $0x18] sm:$0xff]
        %v311 = vld [vmem:[%s249] sm:$0xff]
        %v312 = vld [vmem:[%s249 + $0x8] sm:$0xff]
        %v313 = vld [vmem:[%s249 + $0x10] sm:$0xff]
        %v314 = vld [vmem:[%s249 + $0x18] sm:$0xff]
        %v315 = vld [vmem:[%s258] sm:$0xff]
        %v316 = vld [vmem:[%s258 + $0x8] sm:$0xff]
        %v317 = vld [vmem:[%s258 + $0x10] sm:$0xff]
        %v318 = vld [vmem:[%s258 + $0x18] sm:$0xff]
        %v319 = vmul.f32 %v311, %v311
        %v320 = vmul.f32 %v312, %v312
        %v321 = vmul.f32 %v313, %v313
        %v322 = vmul.f32 %v314, %v314
        %v323 = vmul.f32 %v315, %v315
        %v324 = vmul.f32 %v316, %v316
        %v325 = vmul.f32 %v317, %v317
        %v326 = vmul.f32 %v318, %v318
        %v327 = vmul.f32 %v311, %v315
        %v328 = vmul.f32 %v312, %v316
        %v329 = vmul.f32 %v313, %v317
        %v330 = vmul.f32 %v314, %v318
        %vm331 = vcmask 261120
        %v333 = vsel %vm331, %v311, 0
        %v336 = vsel %vm331, %v312, 0
        %v339 = vsel %vm331, %v313, 0
        %v342 = vsel %vm331, %v314, 0
        %v345 = vsel %vm331, %v315, 0
        %v348 = vsel %vm331, %v316, 0
        %v351 = vsel %vm331, %v317, 0
        %v354 = vsel %vm331, %v318, 0
        %v357 = vsel %vm331, %v319, 0
        %v360 = vsel %vm331, %v320, 0
        %v363 = vsel %vm331, %v321, 0
        %v366 = vsel %vm331, %v322, 0
        %v369 = vsel %vm331, %v323, 0
        %v372 = vsel %vm331, %v324, 0
        %v375 = vsel %vm331, %v325, 0
        %v378 = vsel %vm331, %v326, 0
        %v381 = vsel %vm331, %v327, 0
        %v384 = vsel %vm331, %v328, 0
        %v387 = vsel %vm331, %v329, 0
        %v390 = vsel %vm331, %v330, 0
        %392 = vmatprep.subr.mxu0 0.0
        %393 = vmatpush1.msra.mxu0 %v307
        %394 = vmatprep.subr.mxu0 0.0
        %395 = vmatpush1.msra.mxu0 %v308
        %396 = vmatprep.subr.mxu0 0.0
        %397 = vmatpush1.msra.mxu0 %v309
        %398 = vmatprep.subr.mxu0 0.0
        %399 = vmatpush1.msra.mxu0 %v310
        %400 = vmatprep.subr.mxu0 0.0
        %401 = vmatpush1.msra.mxu0 0.0
        %402 = vmatprep.subr.mxu0 0.0
        %403 = vmatpush1.msra.mxu0 0.0
        %404 = vmatprep.subr.mxu0 0.0
        %405 = vmatpush1.msra.mxu0 0.0
        %406 = vmatprep.subr.mxu0 0.0
        %407 = vmatpush1.msra.mxu0 0.0
        %408 = vmatprep.subr.mxu0 0.0
        %409 = vmatpush1.msra.mxu0 0.0
        %410 = vmatprep.subr.mxu0 0.0
        %411 = vmatpush1.msra.mxu0 0.0
        %412 = vmatprep.subr.mxu0 0.0
        %413 = vmatpush1.msra.mxu0 0.0
        %414 = vmatprep.subr.mxu0 0.0
        %415 = vmatpush1.msra.mxu0 0.0
        %416 = vmatprep.subr.mxu0 0.0
        %417 = vmatpush1.msra.mxu0 0.0
        %418 = vmatprep.subr.mxu0 0.0
        %419 = vmatpush1.msra.mxu0 0.0
        %420 = vmatprep.subr.mxu0 0.0
        %421 = vmatpush1.msra.mxu0 0.0
        %422 = vmatprep.subr.mxu0 0.0
        %423 = vmatpush1.msra.mxu0 0.0
        %424 = vmatprep.subr.mxu0 0.0
        %425 = vmatpush1.msra.mxu0 0.0
        %426 = vmatprep.subr.mxu0 0.0
        %427 = vmatpush1.msra.mxu0 0.0
        %428 = vmatprep.subr.mxu0 0.0
        %429 = vmatpush1.msra.mxu0 0.0
        %430 = vmatprep.subr.mxu0 0.0
        %431 = vmatpush1.msra.mxu0 0.0
        %432 = vmatprep.subr.mxu0 0.0
        %433 = vmatpush1.msra.mxu0 0.0
        %434 = vmatprep.subr.mxu0 0.0
        %435 = vmatpush1.msra.mxu0 0.0
        %436 = vmatprep.subr.mxu0 0.0
        %437 = vmatpush1.msra.mxu0 0.0
        %438 = vmatprep.subr.mxu0 0.0
        %439 = vmatpush1.msra.mxu0 0.0
        %440 = vmatprep.subr.mxu0 0.0
        %441 = vmatpush1.msra.mxu0 0.0
        %442 = vmatprep.subr.mxu0 0.0
        %443 = vmatpush1.msra.mxu0 0.0
        %444 = vmatprep.subr.mxu0 0.0
        %445 = vmatpush1.msra.mxu0 0.0
        %446 = vmatprep.subr.mxu0 0.0
        %447 = vmatpush1.msra.mxu0 0.0
        %448 = vmatprep.subr.mxu0 0.0
        %449 = vmatpush1.msra.mxu0 0.0
        %450 = vmatprep.subr.mxu0 0.0
        %451 = vmatpush1.msra.mxu0 0.0
        %452 = vmatprep.subr.mxu0 0.0
        %453 = vmatpush1.msra.mxu0 0.0
        %454 = vmatprep.subr.mxu0 0.0
        %455 = vmatpush1.msra.mxu0 0.0
        %456 = vmatprep.mubr.f32.mxu0 0.0
        %457 = vmatmul.mubr.f32.gmra.mrb[0].mxu0 %v333
        %v458 = vpop.f32.mrb[0].mxu0
        %v459 = vadd.f32 0.0, %v458
        %v460 = vpop.f32.mrb[0].mxu0
        %461 = vmatprep.mubr.f32.mxu0 0.0
        %462 = vmatmul.mubr.f32.gmra.mrb[0].mxu0 %v336
        %v463 = vpop.f32.mrb[0].mxu0
        %v464 = vadd.f32 0.0, %v463
        %v465 = vpop.f32.mrb[0].mxu0
        %466 = vmatprep.mubr.f32.mxu0 0.0
        %467 = vmatmul.mubr.f32.gmra.mrb[0].mxu0 %v339
        %v468 = vpop.f32.mrb[0].mxu0
        %v469 = vadd.f32 0.0, %v468
        %v470 = vpop.f32.mrb[0].mxu0
        %471 = vmatprep.mubr.f32.mxu0 0.0
        %472 = vmatmul.mubr.f32.gmra.mrb[0].mxu0 %v342
        %v473 = vpop.f32.mrb[0].mxu0
        %v474 = vadd.f32 0.0, %v473
        %v475 = vpop.f32.mrb[0].mxu0
        %476 = vmatprep.mubr.f32.mxu0 0.0
        %477 = vmatmul.mubr.f32.gmra.mrb[0].mxu0 %v345
        %v478 = vpop.f32.mrb[0].mxu0
        %v479 = vadd.f32 0.0, %v478
        %v480 = vpop.f32.mrb[0].mxu0
        %481 = vmatprep.mubr.f32.mxu0 0.0
        %482 = vmatmul.mubr.f32.gmra.mrb[0].mxu0 %v348
        %v483 = vpop.f32.mrb[0].mxu0
        %v484 = vadd.f32 0.0, %v483
        %v485 = vpop.f32.mrb[0].mxu0
        %486 = vmatprep.mubr.f32.mxu0 0.0
        %487 = vmatmul.mubr.f32.gmra.mrb[0].mxu0 %v351
        %v488 = vpop.f32.mrb[0].mxu0
        %v489 = vadd.f32 0.0, %v488
        %v490 = vpop.f32.mrb[0].mxu0
        %491 = vmatprep.mubr.f32.mxu0 0.0
        %492 = vmatmul.mubr.f32.gmra.mrb[0].mxu0 %v354
        %v493 = vpop.f32.mrb[0].mxu0
        %v494 = vadd.f32 0.0, %v493
        %v495 = vpop.f32.mrb[0].mxu0
        %496 = vmatprep.mubr.f32.mxu0 0.0
        %497 = vmatmul.mubr.f32.gmra.mrb[0].mxu0 %v357
        %v498 = vpop.f32.mrb[0].mxu0
        %v499 = vadd.f32 0.0, %v498
        %v500 = vpop.f32.mrb[0].mxu0
        %501 = vmatprep.mubr.f32.mxu0 0.0
        %502 = vmatmul.mubr.f32.gmra.mrb[0].mxu0 %v360
        %v503 = vpop.f32.mrb[0].mxu0
        %v504 = vadd.f32 0.0, %v503
        %v505 = vpop.f32.mrb[0].mxu0
        %506 = vmatprep.mubr.f32.mxu0 0.0
        %507 = vmatmul.mubr.f32.gmra.mrb[0].mxu0 %v363
        %v508 = vpop.f32.mrb[0].mxu0
        %v509 = vadd.f32 0.0, %v508
        %v510 = vpop.f32.mrb[0].mxu0
        %511 = vmatprep.mubr.f32.mxu0 0.0
        %512 = vmatmul.mubr.f32.gmra.mrb[0].mxu0 %v366
        %v513 = vpop.f32.mrb[0].mxu0
        %v514 = vadd.f32 0.0, %v513
        %v515 = vpop.f32.mrb[0].mxu0
        %516 = vmatprep.mubr.f32.mxu0 0.0
        %517 = vmatmul.mubr.f32.gmra.mrb[0].mxu0 %v369
        %v518 = vpop.f32.mrb[0].mxu0
        %v519 = vadd.f32 0.0, %v518
        %v520 = vpop.f32.mrb[0].mxu0
        %521 = vmatprep.mubr.f32.mxu0 0.0
        %522 = vmatmul.mubr.f32.gmra.mrb[0].mxu0 %v372
        %v523 = vpop.f32.mrb[0].mxu0
        %v524 = vadd.f32 0.0, %v523
        %v525 = vpop.f32.mrb[0].mxu0
        %526 = vmatprep.mubr.f32.mxu0 0.0
        %527 = vmatmul.mubr.f32.gmra.mrb[0].mxu0 %v375
        %v528 = vpop.f32.mrb[0].mxu0
        %v529 = vadd.f32 0.0, %v528
        %v530 = vpop.f32.mrb[0].mxu0
        %531 = vmatprep.mubr.f32.mxu0 0.0
        %532 = vmatmul.mubr.f32.gmra.mrb[0].mxu0 %v378
        %v533 = vpop.f32.mrb[0].mxu0
        %v534 = vadd.f32 0.0, %v533
        %v535 = vpop.f32.mrb[0].mxu0
        %536 = vmatprep.mubr.f32.mxu0 0.0
        %537 = vmatmul.mubr.f32.gmra.mrb[0].mxu0 %v381
        %v538 = vpop.f32.mrb[0].mxu0
        %v539 = vadd.f32 0.0, %v538
        %v540 = vpop.f32.mrb[0].mxu0
        %541 = vmatprep.mubr.f32.mxu0 0.0
        %542 = vmatmul.mubr.f32.gmra.mrb[0].mxu0 %v384
        %v543 = vpop.f32.mrb[0].mxu0
        %v544 = vadd.f32 0.0, %v543
        %v545 = vpop.f32.mrb[0].mxu0
        %546 = vmatprep.mubr.f32.mxu0 0.0
        %547 = vmatmul.mubr.f32.gmra.mrb[0].mxu0 %v387
        %v548 = vpop.f32.mrb[0].mxu0
        %v549 = vadd.f32 0.0, %v548
        %v550 = vpop.f32.mrb[0].mxu0
        %551 = vmatprep.mubr.f32.mxu0 0.0
        %552 = vmatmul.mubr.f32.gmra.mrb[0].mxu0 %v390
        %v553 = vpop.f32.mrb[0].mxu0
        %v554 = vadd.f32 0.0, %v553
        %v555 = vpop.f32.mrb[0].mxu0
        %556 = vdwg.mxu0
        %v558 = vsel %vm331, %v303, 0
        %v561 = vsel %vm331, %v304, 0
        %v564 = vsel %vm331, %v305, 0
        %v567 = vsel %vm331, %v306, 0
        %569 = vmatprep.subr.mxu0 0.0
        %570 = vmatpush1.msra.mxu0 %v459
        %571 = vmatprep.subr.mxu0 0.0
        %572 = vmatpush1.msra.mxu0 %v464
        %573 = vmatprep.subr.mxu0 0.0
        %574 = vmatpush1.msra.mxu0 %v469
        %575 = vmatprep.subr.mxu0 0.0
        %576 = vmatpush1.msra.mxu0 %v474
        %577 = vmatprep.subr.mxu0 0.0
        %578 = vmatpush1.msra.mxu0 0.0
        %579 = vmatprep.subr.mxu0 0.0
        %580 = vmatpush1.msra.mxu0 0.0
        %581 = vmatprep.subr.mxu0 0.0
        %582 = vmatpush1.msra.mxu0 0.0
        %583 = vmatprep.subr.mxu0 0.0
        %584 = vmatpush1.msra.mxu0 0.0
        %585 = vmatprep.subr.mxu0 0.0
        %586 = vmatpush1.msra.mxu0 0.0
        %587 = vmatprep.subr.mxu0 0.0
        %588 = vmatpush1.msra.mxu0 0.0
        %589 = vmatprep.subr.mxu0 0.0
        %590 = vmatpush1.msra.mxu0 0.0
        %591 = vmatprep.subr.mxu0 0.0
        %592 = vmatpush1.msra.mxu0 0.0
        %593 = vmatprep.subr.mxu0 0.0
        %594 = vmatpush1.msra.mxu0 0.0
        %595 = vmatprep.subr.mxu0 0.0
        %596 = vmatpush1.msra.mxu0 0.0
        %597 = vmatprep.subr.mxu0 0.0
        %598 = vmatpush1.msra.mxu0 0.0
        %599 = vmatprep.subr.mxu0 0.0
        %600 = vmatpush1.msra.mxu0 0.0
        %601 = vmatprep.subr.mxu0 0.0
        %602 = vmatpush1.msra.mxu0 0.0
        %603 = vmatprep.subr.mxu0 0.0
        %604 = vmatpush1.msra.mxu0 0.0
        %605 = vmatprep.subr.mxu0 0.0
        %606 = vmatpush1.msra.mxu0 0.0
        %607 = vmatprep.subr.mxu0 0.0
        %608 = vmatpush1.msra.mxu0 0.0
        %609 = vmatprep.subr.mxu0 0.0
        %610 = vmatpush1.msra.mxu0 0.0
        %611 = vmatprep.subr.mxu0 0.0
        %612 = vmatpush1.msra.mxu0 0.0
        %613 = vmatprep.subr.mxu0 0.0
        %614 = vmatpush1.msra.mxu0 0.0
        %615 = vmatprep.subr.mxu0 0.0
        %616 = vmatpush1.msra.mxu0 0.0
        %617 = vmatprep.subr.mxu0 0.0
        %618 = vmatpush1.msra.mxu0 0.0
        %619 = vmatprep.subr.mxu0 0.0
        %620 = vmatpush1.msra.mxu0 0.0
        %621 = vmatprep.subr.mxu0 0.0
        %622 = vmatpush1.msra.mxu0 0.0
        %623 = vmatprep.subr.mxu0 0.0
        %624 = vmatpush1.msra.mxu0 0.0
        %625 = vmatprep.subr.mxu0 0.0
        %626 = vmatpush1.msra.mxu0 0.0
        %627 = vmatprep.subr.mxu0 0.0
        %628 = vmatpush1.msra.mxu0 0.0
        %629 = vmatprep.subr.mxu0 0.0
        %630 = vmatpush1.msra.mxu0 0.0
        %631 = vmatprep.subr.mxu0 0.0
        %632 = vmatpush1.msra.mxu0 0.0
        %633 = vmatprep.mubr.f32.mxu0 0.0
        %634 = vmatmul.mubr.f32.gmra.mrb[0].mxu0 %v558
        %v635 = vpop.f32.mrb[0].mxu0
        %v636 = vadd.f32 0.0, %v635
        %v637 = vpop.f32.mrb[0].mxu0
        %638 = vmatprep.mubr.f32.mxu0 0.0
        %639 = vmatmul.mubr.f32.gmra.mrb[0].mxu0 %v561
        %v640 = vpop.f32.mrb[0].mxu0
        %v641 = vadd.f32 0.0, %v640
        %v642 = vpop.f32.mrb[0].mxu0
        %643 = vmatprep.mubr.f32.mxu0 0.0
        %644 = vmatmul.mubr.f32.gmra.mrb[0].mxu0 %v564
        %v645 = vpop.f32.mrb[0].mxu0
        %v646 = vadd.f32 0.0, %v645
        %v647 = vpop.f32.mrb[0].mxu0
        %648 = vmatprep.mubr.f32.mxu0 0.0
        %649 = vmatmul.mubr.f32.gmra.mrb[0].mxu0 %v567
        %v650 = vpop.f32.mrb[0].mxu0
        %v651 = vadd.f32 0.0, %v650
        %v652 = vpop.f32.mrb[0].mxu0
        %653 = vdwg.mxu0
        %654 = vmatprep.subr.mxu0 0.0
        %655 = vmatpush1.msra.mxu0 %v479
        %656 = vmatprep.subr.mxu0 0.0
        %657 = vmatpush1.msra.mxu0 %v484
        %658 = vmatprep.subr.mxu0 0.0
        %659 = vmatpush1.msra.mxu0 %v489
        %660 = vmatprep.subr.mxu0 0.0
        %661 = vmatpush1.msra.mxu0 %v494
        %662 = vmatprep.subr.mxu0 0.0
        %663 = vmatpush1.msra.mxu0 0.0
        %664 = vmatprep.subr.mxu0 0.0
        %665 = vmatpush1.msra.mxu0 0.0
        %666 = vmatprep.subr.mxu0 0.0
        %667 = vmatpush1.msra.mxu0 0.0
        %668 = vmatprep.subr.mxu0 0.0
        %669 = vmatpush1.msra.mxu0 0.0
        %670 = vmatprep.subr.mxu0 0.0
        %671 = vmatpush1.msra.mxu0 0.0
        %672 = vmatprep.subr.mxu0 0.0
        %673 = vmatpush1.msra.mxu0 0.0
        %674 = vmatprep.subr.mxu0 0.0
        %675 = vmatpush1.msra.mxu0 0.0
        %676 = vmatprep.subr.mxu0 0.0
        %677 = vmatpush1.msra.mxu0 0.0
        %678 = vmatprep.subr.mxu0 0.0
        %679 = vmatpush1.msra.mxu0 0.0
        %680 = vmatprep.subr.mxu0 0.0
        %681 = vmatpush1.msra.mxu0 0.0
        %682 = vmatprep.subr.mxu0 0.0
        %683 = vmatpush1.msra.mxu0 0.0
        %684 = vmatprep.subr.mxu0 0.0
        %685 = vmatpush1.msra.mxu0 0.0
        %686 = vmatprep.subr.mxu0 0.0
        %687 = vmatpush1.msra.mxu0 0.0
        %688 = vmatprep.subr.mxu0 0.0
        %689 = vmatpush1.msra.mxu0 0.0
        %690 = vmatprep.subr.mxu0 0.0
        %691 = vmatpush1.msra.mxu0 0.0
        %692 = vmatprep.subr.mxu0 0.0
        %693 = vmatpush1.msra.mxu0 0.0
        %694 = vmatprep.subr.mxu0 0.0
        %695 = vmatpush1.msra.mxu0 0.0
        %696 = vmatprep.subr.mxu0 0.0
        %697 = vmatpush1.msra.mxu0 0.0
        %698 = vmatprep.subr.mxu0 0.0
        %699 = vmatpush1.msra.mxu0 0.0
        %700 = vmatprep.subr.mxu0 0.0
        %701 = vmatpush1.msra.mxu0 0.0
        %702 = vmatprep.subr.mxu0 0.0
        %703 = vmatpush1.msra.mxu0 0.0
        %704 = vmatprep.subr.mxu0 0.0
        %705 = vmatpush1.msra.mxu0 0.0
        %706 = vmatprep.subr.mxu0 0.0
        %707 = vmatpush1.msra.mxu0 0.0
        %708 = vmatprep.subr.mxu0 0.0
        %709 = vmatpush1.msra.mxu0 0.0
        %710 = vmatprep.subr.mxu0 0.0
        %711 = vmatpush1.msra.mxu0 0.0
        %712 = vmatprep.subr.mxu0 0.0
        %713 = vmatpush1.msra.mxu0 0.0
        %714 = vmatprep.subr.mxu0 0.0
        %715 = vmatpush1.msra.mxu0 0.0
        %716 = vmatprep.subr.mxu0 0.0
        %717 = vmatpush1.msra.mxu0 0.0
        %718 = vmatprep.mubr.f32.mxu0 0.0
        %719 = vmatmul.mubr.f32.gmra.mrb[0].mxu0 %v558
        %v720 = vpop.f32.mrb[0].mxu0
        %v721 = vadd.f32 0.0, %v720
        %v722 = vpop.f32.mrb[0].mxu0
        %723 = vmatprep.mubr.f32.mxu0 0.0
        %724 = vmatmul.mubr.f32.gmra.mrb[0].mxu0 %v561
        %v725 = vpop.f32.mrb[0].mxu0
        %v726 = vadd.f32 0.0, %v725
        %v727 = vpop.f32.mrb[0].mxu0
        %728 = vmatprep.mubr.f32.mxu0 0.0
        %729 = vmatmul.mubr.f32.gmra.mrb[0].mxu0 %v564
        %v730 = vpop.f32.mrb[0].mxu0
        %v731 = vadd.f32 0.0, %v730
        %v732 = vpop.f32.mrb[0].mxu0
        %733 = vmatprep.mubr.f32.mxu0 0.0
        %734 = vmatmul.mubr.f32.gmra.mrb[0].mxu0 %v567
        %v735 = vpop.f32.mrb[0].mxu0
        %v736 = vadd.f32 0.0, %v735
        %v737 = vpop.f32.mrb[0].mxu0
        %738 = vdwg.mxu0
        %739 = vmatprep.subr.mxu0 0.0
        %740 = vmatpush1.msra.mxu0 %v499
        %741 = vmatprep.subr.mxu0 0.0
        %742 = vmatpush1.msra.mxu0 %v504
        %743 = vmatprep.subr.mxu0 0.0
        %744 = vmatpush1.msra.mxu0 %v509
        %745 = vmatprep.subr.mxu0 0.0
        %746 = vmatpush1.msra.mxu0 %v514
        %747 = vmatprep.subr.mxu0 0.0
        %748 = vmatpush1.msra.mxu0 0.0
        %749 = vmatprep.subr.mxu0 0.0
        %750 = vmatpush1.msra.mxu0 0.0
        %751 = vmatprep.subr.mxu0 0.0
        %752 = vmatpush1.msra.mxu0 0.0
        %753 = vmatprep.subr.mxu0 0.0
        %754 = vmatpush1.msra.mxu0 0.0
        %755 = vmatprep.subr.mxu0 0.0
        %756 = vmatpush1.msra.mxu0 0.0
        %757 = vmatprep.subr.mxu0 0.0
        %758 = vmatpush1.msra.mxu0 0.0
        %759 = vmatprep.subr.mxu0 0.0
        %760 = vmatpush1.msra.mxu0 0.0
        %761 = vmatprep.subr.mxu0 0.0
        %762 = vmatpush1.msra.mxu0 0.0
        %763 = vmatprep.subr.mxu0 0.0
        %764 = vmatpush1.msra.mxu0 0.0
        %765 = vmatprep.subr.mxu0 0.0
        %766 = vmatpush1.msra.mxu0 0.0
        %767 = vmatprep.subr.mxu0 0.0
        %768 = vmatpush1.msra.mxu0 0.0
        %769 = vmatprep.subr.mxu0 0.0
        %770 = vmatpush1.msra.mxu0 0.0
        %771 = vmatprep.subr.mxu0 0.0
        %772 = vmatpush1.msra.mxu0 0.0
        %773 = vmatprep.subr.mxu0 0.0
        %774 = vmatpush1.msra.mxu0 0.0
        %775 = vmatprep.subr.mxu0 0.0
        %776 = vmatpush1.msra.mxu0 0.0
        %777 = vmatprep.subr.mxu0 0.0
        %778 = vmatpush1.msra.mxu0 0.0
        %779 = vmatprep.subr.mxu0 0.0
        %780 = vmatpush1.msra.mxu0 0.0
        %781 = vmatprep.subr.mxu0 0.0
        %782 = vmatpush1.msra.mxu0 0.0
        %783 = vmatprep.subr.mxu0 0.0
        %784 = vmatpush1.msra.mxu0 0.0
        %785 = vmatprep.subr.mxu0 0.0
        %786 = vmatpush1.msra.mxu0 0.0
        %787 = vmatprep.subr.mxu0 0.0
        %788 = vmatpush1.msra.mxu0 0.0
        %789 = vmatprep.subr.mxu0 0.0
        %790 = vmatpush1.msra.mxu0 0.0
        %791 = vmatprep.subr.mxu0 0.0
        %792 = vmatpush1.msra.mxu0 0.0
        %793 = vmatprep.subr.mxu0 0.0
        %794 = vmatpush1.msra.mxu0 0.0
        %795 = vmatprep.subr.mxu0 0.0
        %796 = vmatpush1.msra.mxu0 0.0
        %797 = vmatprep.subr.mxu0 0.0
        %798 = vmatpush1.msra.mxu0 0.0
        %799 = vmatprep.subr.mxu0 0.0
        %800 = vmatpush1.msra.mxu0 0.0
        %801 = vmatprep.subr.mxu0 0.0
        %802 = vmatpush1.msra.mxu0 0.0
        %803 = vmatprep.mubr.f32.mxu0 0.0
        %804 = vmatmul.mubr.f32.gmra.mrb[0].mxu0 %v558
        %v805 = vpop.f32.mrb[0].mxu0
        %v806 = vadd.f32 0.0, %v805
        %v807 = vpop.f32.mrb[0].mxu0
        %808 = vmatprep.mubr.f32.mxu0 0.0
        %809 = vmatmul.mubr.f32.gmra.mrb[0].mxu0 %v561
        %v810 = vpop.f32.mrb[0].mxu0
        %v811 = vadd.f32 0.0, %v810
        %v812 = vpop.f32.mrb[0].mxu0
        %813 = vmatprep.mubr.f32.mxu0 0.0
        %814 = vmatmul.mubr.f32.gmra.mrb[0].mxu0 %v564
        %v815 = vpop.f32.mrb[0].mxu0
        %v816 = vadd.f32 0.0, %v815
        %v817 = vpop.f32.mrb[0].mxu0
        %818 = vmatprep.mubr.f32.mxu0 0.0
        %819 = vmatmul.mubr.f32.gmra.mrb[0].mxu0 %v567
        %v820 = vpop.f32.mrb[0].mxu0
        %v821 = vadd.f32 0.0, %v820
        %v822 = vpop.f32.mrb[0].mxu0
        %823 = vdwg.mxu0
        %824 = vmatprep.subr.mxu0 0.0
        %825 = vmatpush1.msra.mxu0 %v519
        %826 = vmatprep.subr.mxu0 0.0
        %827 = vmatpush1.msra.mxu0 %v524
        %828 = vmatprep.subr.mxu0 0.0
        %829 = vmatpush1.msra.mxu0 %v529
        %830 = vmatprep.subr.mxu0 0.0
        %831 = vmatpush1.msra.mxu0 %v534
        %832 = vmatprep.subr.mxu0 0.0
        %833 = vmatpush1.msra.mxu0 0.0
        %834 = vmatprep.subr.mxu0 0.0
        %835 = vmatpush1.msra.mxu0 0.0
        %836 = vmatprep.subr.mxu0 0.0
        %837 = vmatpush1.msra.mxu0 0.0
        %838 = vmatprep.subr.mxu0 0.0
        %839 = vmatpush1.msra.mxu0 0.0
        %840 = vmatprep.subr.mxu0 0.0
        %841 = vmatpush1.msra.mxu0 0.0
        %842 = vmatprep.subr.mxu0 0.0
        %843 = vmatpush1.msra.mxu0 0.0
        %844 = vmatprep.subr.mxu0 0.0
        %845 = vmatpush1.msra.mxu0 0.0
        %846 = vmatprep.subr.mxu0 0.0
        %847 = vmatpush1.msra.mxu0 0.0
        %848 = vmatprep.subr.mxu0 0.0
        %849 = vmatpush1.msra.mxu0 0.0
        %850 = vmatprep.subr.mxu0 0.0
        %851 = vmatpush1.msra.mxu0 0.0
        %852 = vmatprep.subr.mxu0 0.0
        %853 = vmatpush1.msra.mxu0 0.0
        %854 = vmatprep.subr.mxu0 0.0
        %855 = vmatpush1.msra.mxu0 0.0
        %856 = vmatprep.subr.mxu0 0.0
        %857 = vmatpush1.msra.mxu0 0.0
        %858 = vmatprep.subr.mxu0 0.0
        %859 = vmatpush1.msra.mxu0 0.0
        %860 = vmatprep.subr.mxu0 0.0
        %861 = vmatpush1.msra.mxu0 0.0
        %862 = vmatprep.subr.mxu0 0.0
        %863 = vmatpush1.msra.mxu0 0.0
        %864 = vmatprep.subr.mxu0 0.0
        %865 = vmatpush1.msra.mxu0 0.0
        %866 = vmatprep.subr.mxu0 0.0
        %867 = vmatpush1.msra.mxu0 0.0
        %868 = vmatprep.subr.mxu0 0.0
        %869 = vmatpush1.msra.mxu0 0.0
        %870 = vmatprep.subr.mxu0 0.0
        %871 = vmatpush1.msra.mxu0 0.0
        %872 = vmatprep.subr.mxu0 0.0
        %873 = vmatpush1.msra.mxu0 0.0
        %874 = vmatprep.subr.mxu0 0.0
        %875 = vmatpush1.msra.mxu0 0.0
        %876 = vmatprep.subr.mxu0 0.0
        %877 = vmatpush1.msra.mxu0 0.0
        %878 = vmatprep.subr.mxu0 0.0
        %879 = vmatpush1.msra.mxu0 0.0
        %880 = vmatprep.subr.mxu0 0.0
        %881 = vmatpush1.msra.mxu0 0.0
        %882 = vmatprep.subr.mxu0 0.0
        %883 = vmatpush1.msra.mxu0 0.0
        %884 = vmatprep.subr.mxu0 0.0
        %885 = vmatpush1.msra.mxu0 0.0
        %886 = vmatprep.subr.mxu0 0.0
        %887 = vmatpush1.msra.mxu0 0.0
        %888 = vmatprep.mubr.f32.mxu0 0.0
        %889 = vmatmul.mubr.f32.gmra.mrb[0].mxu0 %v558
        %v890 = vpop.f32.mrb[0].mxu0
        %v891 = vadd.f32 0.0, %v890
        %v892 = vpop.f32.mrb[0].mxu0
        %893 = vmatprep.mubr.f32.mxu0 0.0
        %894 = vmatmul.mubr.f32.gmra.mrb[0].mxu0 %v561
        %v895 = vpop.f32.mrb[0].mxu0
        %v896 = vadd.f32 0.0, %v895
        %v897 = vpop.f32.mrb[0].mxu0
        %898 = vmatprep.mubr.f32.mxu0 0.0
        %899 = vmatmul.mubr.f32.gmra.mrb[0].mxu0 %v564
        %v900 = vpop.f32.mrb[0].mxu0
        %v901 = vadd.f32 0.0, %v900
        %v902 = vpop.f32.mrb[0].mxu0
        %903 = vmatprep.mubr.f32.mxu0 0.0
        %904 = vmatmul.mubr.f32.gmra.mrb[0].mxu0 %v567
        %v905 = vpop.f32.mrb[0].mxu0
        %v906 = vadd.f32 0.0, %v905
        %v907 = vpop.f32.mrb[0].mxu0
        %908 = vdwg.mxu0
        %909 = vmatprep.subr.mxu0 0.0
        %910 = vmatpush1.msra.mxu0 %v539
        %911 = vmatprep.subr.mxu0 0.0
        %912 = vmatpush1.msra.mxu0 %v544
        %913 = vmatprep.subr.mxu0 0.0
        %914 = vmatpush1.msra.mxu0 %v549
        %915 = vmatprep.subr.mxu0 0.0
        %916 = vmatpush1.msra.mxu0 %v554
        %917 = vmatprep.subr.mxu0 0.0
        %918 = vmatpush1.msra.mxu0 0.0
        %919 = vmatprep.subr.mxu0 0.0
        %920 = vmatpush1.msra.mxu0 0.0
        %921 = vmatprep.subr.mxu0 0.0
        %922 = vmatpush1.msra.mxu0 0.0
        %923 = vmatprep.subr.mxu0 0.0
        %924 = vmatpush1.msra.mxu0 0.0
        %925 = vmatprep.subr.mxu0 0.0
        %926 = vmatpush1.msra.mxu0 0.0
        %927 = vmatprep.subr.mxu0 0.0
        %928 = vmatpush1.msra.mxu0 0.0
        %929 = vmatprep.subr.mxu0 0.0
        %930 = vmatpush1.msra.mxu0 0.0
        %931 = vmatprep.subr.mxu0 0.0
        %932 = vmatpush1.msra.mxu0 0.0
        %933 = vmatprep.subr.mxu0 0.0
        %934 = vmatpush1.msra.mxu0 0.0
        %935 = vmatprep.subr.mxu0 0.0
        %936 = vmatpush1.msra.mxu0 0.0
        %937 = vmatprep.subr.mxu0 0.0
        %938 = vmatpush1.msra.mxu0 0.0
        %939 = vmatprep.subr.mxu0 0.0
        %940 = vmatpush1.msra.mxu0 0.0
        %941 = vmatprep.subr.mxu0 0.0
        %942 = vmatpush1.msra.mxu0 0.0
        %943 = vmatprep.subr.mxu0 0.0
        %944 = vmatpush1.msra.mxu0 0.0
        %945 = vmatprep.subr.mxu0 0.0
        %946 = vmatpush1.msra.mxu0 0.0
        %947 = vmatprep.subr.mxu0 0.0
        %948 = vmatpush1.msra.mxu0 0.0
        %949 = vmatprep.subr.mxu0 0.0
        %950 = vmatpush1.msra.mxu0 0.0
        %951 = vmatprep.subr.mxu0 0.0
        %952 = vmatpush1.msra.mxu0 0.0
        %953 = vmatprep.subr.mxu0 0.0
        %954 = vmatpush1.msra.mxu0 0.0
        %955 = vmatprep.subr.mxu0 0.0
        %956 = vmatpush1.msra.mxu0 0.0
        %957 = vmatprep.subr.mxu0 0.0
        %958 = vmatpush1.msra.mxu0 0.0
        %959 = vmatprep.subr.mxu0 0.0
        %960 = vmatpush1.msra.mxu0 0.0
        %961 = vmatprep.subr.mxu0 0.0
        %962 = vmatpush1.msra.mxu0 0.0
        %963 = vmatprep.subr.mxu0 0.0
        %964 = vmatpush1.msra.mxu0 0.0
        %965 = vmatprep.subr.mxu0 0.0
        %966 = vmatpush1.msra.mxu0 0.0
        %967 = vmatprep.subr.mxu0 0.0
        %968 = vmatpush1.msra.mxu0 0.0
        %969 = vmatprep.subr.mxu0 0.0
        %970 = vmatpush1.msra.mxu0 0.0
        %971 = vmatprep.subr.mxu0 0.0
        %972 = vmatpush1.msra.mxu0 0.0
        %973 = vmatprep.mubr.f32.mxu0 0.0
        %974 = vmatmul.mubr.f32.gmra.mrb[0].mxu0 %v558
        %v975 = vpop.f32.mrb[0].mxu0
        %v976 = vadd.f32 0.0, %v975
        %v977 = vpop.f32.mrb[0].mxu0
        %978 = vmatprep.mubr.f32.mxu0 0.0
        %979 = vmatmul.mubr.f32.gmra.mrb[0].mxu0 %v561
        %v980 = vpop.f32.mrb[0].mxu0
        %v981 = vadd.f32 0.0, %v980
        %v982 = vpop.f32.mrb[0].mxu0
        %983 = vmatprep.mubr.f32.mxu0 0.0
        %984 = vmatmul.mubr.f32.gmra.mrb[0].mxu0 %v564
        %v985 = vpop.f32.mrb[0].mxu0
        %v986 = vadd.f32 0.0, %v985
        %v987 = vpop.f32.mrb[0].mxu0
        %988 = vmatprep.mubr.f32.mxu0 0.0
        %989 = vmatmul.mubr.f32.gmra.mrb[0].mxu0 %v567
        %v990 = vpop.f32.mrb[0].mxu0
        %v991 = vadd.f32 0.0, %v990
        %v992 = vpop.f32.mrb[0].mxu0
        %993 = vdwg.mxu0
        %v994 = vmul.f32 %v636, %v636
        %v995 = vmul.f32 %v641, %v641
        %v996 = vmul.f32 %v646, %v646
        %v997 = vmul.f32 %v651, %v651
        %v998 = vmul.f32 %v721, %v721
        %v999 = vmul.f32 %v726, %v726
        %v1000 = vmul.f32 %v731, %v731
        %v1001 = vmul.f32 %v736, %v736
        %v1002 = vmul.f32 %v636, %v721
        %v1003 = vmul.f32 %v641, %v726
        %v1004 = vmul.f32 %v646, %v731
        %v1005 = vmul.f32 %v651, %v736
        %v1006 = vsub.f32 %v806, %v994
        %v1007 = vsub.f32 %v811, %v995
        %v1008 = vsub.f32 %v816, %v996
        %v1009 = vsub.f32 %v821, %v997
        %v1010 = vsub.f32 %v891, %v998
        %v1011 = vsub.f32 %v896, %v999
        %v1012 = vsub.f32 %v901, %v1000
        %v1013 = vsub.f32 %v906, %v1001
        %v1014 = vsub.f32 %v976, %v1002
        %v1015 = vsub.f32 %v981, %v1003
        %v1016 = vsub.f32 %v986, %v1004
        %v1017 = vsub.f32 %v991, %v1005
        %v1018 = vmul.f32 %v1002, 2.0
        %v1019 = vmul.f32 %v1003, 2.0
        %v1020 = vmul.f32 %v1004, 2.0
        %v1021 = vmul.f32 %v1005, 2.0
        %v1022 = vadd.f32 %v1018, 0.0001
        %v1023 = vadd.f32 %v1019, 0.0001
        %v1024 = vadd.f32 %v1020, 0.0001
        %v1025 = vadd.f32 %v1021, 0.0001
        %v1026 = vmul.f32 %v1014, 2.0
        %v1027 = vmul.f32 %v1015, 2.0
        %v1028 = vmul.f32 %v1016, 2.0
        %v1029 = vmul.f32 %v1017, 2.0
        %v1030 = vadd.f32 %v1026, 0.0009
        %v1031 = vadd.f32 %v1027, 0.0009
        %v1032 = vadd.f32 %v1028, 0.0009
        %v1033 = vadd.f32 %v1029, 0.0009
        %v1034 = vmul.f32 %v1022, %v1030
        %v1035 = vmul.f32 %v1023, %v1031
        %v1036 = vmul.f32 %v1024, %v1032
        %v1037 = vmul.f32 %v1025, %v1033
        %v1038 = vadd.f32 %v994, %v998
        %v1039 = vadd.f32 %v995, %v999
        %v1040 = vadd.f32 %v996, %v1000
        %v1041 = vadd.f32 %v997, %v1001
        %v1042 = vadd.f32 %v1038, 0.0001
        %v1043 = vadd.f32 %v1039, 0.0001
        %v1044 = vadd.f32 %v1040, 0.0001
        %v1045 = vadd.f32 %v1041, 0.0001
        %v1046 = vadd.f32 %v1006, %v1010
        %v1047 = vadd.f32 %v1007, %v1011
        %v1048 = vadd.f32 %v1008, %v1012
        %v1049 = vadd.f32 %v1009, %v1013
        %v1050 = vadd.f32 %v1046, 0.0009
        %v1051 = vadd.f32 %v1047, 0.0009
        %v1052 = vadd.f32 %v1048, 0.0009
        %v1053 = vadd.f32 %v1049, 0.0009
        %v1054 = vmul.f32 %v1042, %v1050
        %v1055 = vmul.f32 %v1043, %v1051
        %v1056 = vmul.f32 %v1044, %v1052
        %v1057 = vmul.f32 %v1045, %v1053
        %v1058 = vrcp.pop %v1054
        %v1059 = vrcp.pop %v1055
        %v1060 = vrcp.pop %v1056
        %v1061 = vrcp.pop %v1057
        %v1062 = vmul.f32 %v1034, %v1058
        %v1063 = vmul.f32 %v1035, %v1059
        %v1064 = vmul.f32 %v1036, %v1060
        %v1065 = vmul.f32 %v1037, %v1061
        %v1066 = vld [vmem:[%s298] sm:$0xff]
        %v1067 = vld [vmem:[%s298 + $0x8] sm:$0xff]
        %v1068 = vld [vmem:[%s298 + $0x10] sm:$0xff]
        %v1069 = vld [vmem:[%s298 + $0x18] sm:$0xf]
        %v1070 = vmul.f32 %v1062, %v1066
        %v1071 = vmul.f32 %v1063, %v1067
        %v1072 = vmul.f32 %v1064, %v1068
        %v1073 = vmul.f32 %v1065, %v1069
        %vm1074 = vcmask 228352
        %v1075 = vsel %vm1074, %v1070, 0.0
        %v1076 = vsel %vm1074, %v1071, 0.0
        %v1077 = vadd.f32 %v1075, %v1076
        %v1078 = vsel %vm1074, %v1072, 0.0
        %v1079 = vadd.f32 %v1077, %v1078
        %vm1080 = vcmask 224256
        %v1081 = vsel %vm1080, %v1073, 0.0
        %v1082 = vadd.f32 %v1079, %v1081
        %1083 = vadd.xlane.f32.xlu0 %v1082
        %v1084 = vpop.xlane.xlu0 %1083
        %v1085 = vrot.slane %v1084, 4
        %v1086 = vadd.f32 %v1084, %v1085
        %v1087 = vrot.slane %v1086, 2
        %v1088 = vadd.f32 %v1086, %v1087
        %v1089 = vrot.slane %v1088, 1
        %v1090 = vadd.f32 %v1088, %v1089
        %s1091 = vtos %v1090
        %v1092 = vsel %vm1074, %v1066, 0.0
        %v1093 = vsel %vm1074, %v1067, 0.0
        %v1094 = vadd.f32 %v1092, %v1093
        %v1095 = vsel %vm1074, %v1068, 0.0
        %v1096 = vadd.f32 %v1094, %v1095
        %v1097 = vsel %vm1080, %v1069, 0.0
        %v1098 = vadd.f32 %v1096, %v1097
        %1099 = vadd.xlane.f32.xlu0 %v1098
        %v1100 = vpop.xlane.xlu0 %1099
        %v1101 = vrot.slane %v1100, 4
        %v1102 = vadd.f32 %v1100, %v1101
        %v1103 = vrot.slane %v1102, 2
        %v1104 = vadd.f32 %v1102, %v1103
        %v1105 = vrot.slane %v1104, 1
        %v1106 = vadd.f32 %v1104, %v1105
        %s1107 = vtos %v1106
        %v1108 = vlaneseq
        %v1109 = vand.u32 %v1108, 127
        %vm1110 = vcmp.eq.s32.totalorder %v1109, 0
        %vm1111 = vcmp.eq.s32.totalorder %v1109, 1
        %v1112 = vstv %s1107
        %v1113 = vsel %vm1111, %v1112, 0.0
        %v1114 = vstv %s1091
        %v1115 = vsel %vm1110, %v1114, %v1113
        %1116 = vst [vmem:[%s302] sm:$0xff] %v1115
        %p1117 = scmp.lt.s32.totalorder %s22, 1
        %s1118 = scalar_select %p1117, %s22, 1
        %s1119 = smul.addr %s1118, 8
        %s1120 = scalar_lea.vmem %s5, %s1119
        // Predicated region
        $region49: #{_ssim_sums_masked.1} parent=39 // pred_check
          %p1121 = pneg %p160
        $region50: #{_ssim_sums_masked.1} parent=39 // pred_check_branch
          %1123 = sbr.rel (%p1121) target = $region52
        $region51: #{_ssim_sums_masked.1} parent=39 // pred_region
          _
        $region52: #{_ssim_sums_masked.1} parent=39 // pred_fallthru
          _
      $region40: #{_ssim_sums_masked.1} parent=5 // pred_fallthru
        _
      %p1124 = scmp.le.s32.totalorder 2, %s17
      // Predicated region
      $region53: #{_ssim_sums_masked.1} parent=5 // pred_check
        %p1125 = pneg %p1124
      $region54: #{_ssim_sums_masked.1} parent=5 // pred_check_branch
        %1127 = sbr.rel (%p1125) target = $region56
      $region55: #{_ssim_sums_masked.1} parent=5 // pred_region
        %s1128 = ssub.s32 %s17, 2
        // Predicated region
        $region57: #{_ssim_sums_masked.1} parent=55 // pred_check
          %p1129 = pneg %p166
        $region58: #{_ssim_sums_masked.1} parent=55 // pred_check_branch
          %1131 = sbr.rel (%p1129) target = $region60
        $region59: #{_ssim_sums_masked.1} parent=55 // pred_region
          %p1132 = scmp.lt.s32.totalorder %s23, 1
          %s1133 = scalar_select %p1132, %s23, 1
          %s1134 = smul.addr %s1133, 8
          %s1135 = scalar_lea.vmem %s5, %s1134
        $region60: #{_ssim_sums_masked.1} parent=55 // pred_fallthru
          _
      $region56: #{_ssim_sums_masked.1} parent=5 // pred_fallthru
        _
    $region6: #{_ssim_sums_masked.1} parent=1 // loop_footer
      %s21 = sadd.s32 1, %s17
    $region7: #{_ssim_sums_masked.1} parent=1 // loop_footer_branch
      %16 = sbr.rel target = $region3
    $region8: #{_ssim_sums_masked.1} parent=1 // loop_exit
      _
    %1136 = vsyncpa [#allocation3], 1
    %s1137 = scalar_lea.sflag [#allocation3], 1
    %1138 = vsyncpa %s1137, 1
    %1139 = vsyncpa [#allocation5], 1
    %s1140 = scalar_lea.sflag [#allocation5], 1
    %1141 = vsyncpa %s1140, 1

</llo_original>
